<compile_context>
chip_gen: v7x
topology: tpu7x:2x2x1
jax: 0.10.0
libtpu: 0.0.40
codegen_flags: <defaults>
</compile_context>

<pallas_src>
import functools

import numpy as np
import jax
import jax.numpy as jnp
from jax import lax
from jax.experimental import pallas as pl
from jax.experimental.pallas import tpu as pltpu


# Standard VGG configs (same grammar as the PyTorch file).
CFG = {
    'A': [64, 'M', 128, 'M', 256, 256, 'M', 512, 512, 'M', 512, 512, 'M'],
    'B': [64, 64, 'M', 128, 128, 'M', 256, 256, 'M', 512, 512, 'M', 512, 512, 'M'],
    'D': [64, 64, 'M', 128, 128, 'M', 256, 256, 256, 'M', 512, 512, 512, 'M',
          512, 512, 512, 'M'],
    'E': [64, 64, 'M', 128, 128, 'M', 256, 256, 256, 256, 'M', 512, 512, 512, 512,
          'M', 512, 512, 512, 512, 'M'],
}


@functools.lru_cache(maxsize=None)
def _vmem_limit_bytes():
    """Per-generation scoped-VMEM limit (v5e/v6e: ~100 MiB, v7x: ~54 MiB)."""
    cap = None
    try:
        info = pltpu.get_tpu_info()
        for name in ("vmem_capacity_bytes", "vmem_size_bytes", "vmem_bytes"):
            cap = getattr(info, name, None)
            if cap:
                break
    except Exception:
        cap = None
    if not cap:
        cap = 64 * 1024 * 1024  # conservative: v7x physical VMEM per TensorCore
    return int(min(0.85 * cap, 100 * 1024 * 1024))


# ----------------------------------------------------------------------------
# Conv 3x3 (padding=1, stride=1) + bias + ReLU (+ optional fused 2x2 maxpool).
# ----------------------------------------------------------------------------
def _conv_epilogue(acc, b_ref, o_ref, *, th, wout, pool):
    """acc: (th*W, Cout) f32 MXU result.  Bias + ReLU (+ 2x2 maxpool) + store."""
    cout = o_ref.shape[-1]
    out = jnp.maximum(acc + b_ref[...].astype(jnp.float32), 0.0)
    out = out.reshape(th, wout, cout)
    if pool:
        out = out.reshape(th, wout // 2, 2, cout)
        out = jnp.max(out, axis=2)                      # pair columns
        out = out.reshape(th // 2, 2, wout // 2, cout)
        out = jnp.max(out, axis=1)                      # pair rows
    o_ref[0] = out.astype(o_ref.dtype)


def _conv3x3_slab_kernel(x_ref, w_ref, b_ref, o_ref, *, th, wout, pool):
    """General 3x3 path.
       x_ref: (1, H+2, W+2, Cin) zero-padded image (resident across slabs), bf16.
       w_ref: (9*Cin, Cout) bf16; b_ref: (1, Cout) f32.
       o_ref: (1, th, W, Cout) or (1, th//2, W//2, Cout) when the pool is fused."""
    cin = x_ref.shape[-1]
    i = pl.program_id(1)
    h0 = i * th
    if th % 8 == 0:
        h0 = pl.multiple_of(h0, 8)

    # im2col LHS built by pure slicing (no padded scratch, no memset):
    # tap(dy,dx)[r, w, c] = x_padded[h0 + dy + r, dx + w, c].
    taps = []
    for dy in range(3):
        rows = x_ref[0, pl.ds(h0 + dy, th), :, :]        # (th, W+2, Cin)
        for dx in range(3):
            taps.append(rows[:, dx:dx + wout, :])        # (th, W, Cin)
    lhs = jnp.concatenate(taps, axis=-1).reshape(th * wout, 9 * cin)

    # Single fused K = 9*Cin matmul per slab (bf16 operands, f32 accumulation).
    acc = jnp.dot(lhs, w_ref[...], preferred_element_type=jnp.float32)
    _conv_epilogue(acc, b_ref, o_ref, th=th, wout=wout, pool=pool)


def _matmul_slab_kernel(x_ref, w_ref, b_ref, o_ref, *, th, wout, pool):
    """Pre-im2col'd path (the Cin=3 stem): x_ref is a (1, th, W, 9*Cin) slab."""
    k = x_ref.shape[-1]
    lhs = x_ref[0].reshape(th * wout, k)
    acc = jnp.dot(lhs, w_ref[...], preferred_element_type=jnp.float32)
    _conv_epilogue(acc, b_ref, o_ref, th=th, wout=wout, pool=pool)


def _pick_th(H, W, K, need_even):
    """Largest divisor of H (even if pooling) keeping the slab working set modest."""
    divs = [d for d in range(1, H + 1)
            if H % d == 0 and (not need_even or d % 2 == 0)]
    if not divs:
        return H
    for d in sorted(divs, reverse=True):
        if d * W <= 4096 and d * W * K * 2 <= 8 * 1024 * 1024:
            return d
    return min(divs)


def _host_im2col_3x3(x_nhwc):
    """(N,H,W,C) -> (N,H,W,9C) patch extraction with padding=1 (plain XLA)."""
    N, H, W, C = x_nhwc.shape
    xp = jnp.pad(x_nhwc, ((0, 0), (1, 1), (1, 1), (0, 0)))
    taps = [xp[:, dy:dy + H, dx:dx + W, :] for dy in range(3) for dx in range(3)]
    return jnp.concatenate(taps, axis=-1)


def conv3x3_relu(x_nhwc, w_hwio, b, *, fuse_pool=False):
    """3x3 conv (pad=1) + bias + ReLU (+ optionally fused 2x2 maxpool), NHWC."""
    x_nhwc = x_nhwc.astype(jnp.bfloat16)
    N, H, W, Cin = x_nhwc.shape
    Cout = w_hwio.shape[-1]
    K = 9 * Cin
    fuse_pool = bool(fuse_pool and H % 2 == 0 and W % 2 == 0)

    w_fused = w_hwio.astype(jnp.bfloat16).reshape(K, Cout)   # (dy,dx,cin) -> K
    b2 = b.astype(jnp.float32).reshape(1, Cout)

    pre_im2col = K <= 128                  # only the RGB stem layer in practice
    th = _pick_th(H, W, K, need_even=fuse_pool)
    n_slab = H // th
    Ho, Wo = (H // 2, W // 2) if fuse_pool else (H, W)
    tho = th // 2 if fuse_pool else th

    if pre_im2col:
        x_in = _host_im2col_3x3(x_nhwc)                      # (N, H, W, K)
        in_spec_x = pl.BlockSpec((1, th, W, K), lambda n, i: (n, i, 0, 0))
        kern = functools.partial(_matmul_slab_kernel, th=th, wout=W,
                                 pool=fuse_pool)
    else:
        x_in = jnp.pad(x_nhwc, ((0, 0), (1, 1), (1, 1), (0, 0)))  # (N, H+2, W+2, Cin)
        in_spec_x = pl.BlockSpec((1, H + 2, W + 2, Cin), lambda n, i: (n, 0, 0, 0))
        kern = functools.partial(_conv3x3_slab_kernel, th=th, wout=W,
                                 pool=fuse_pool)

    flops = 2 * N * H * W * K * Cout
    bytes_accessed = (int(np.prod(x_in.shape)) * 2
                      + N * Ho * Wo * Cout * 2 + K * Cout * 2 + Cout * 4)

    return pl.pallas_call(
        kern,
        out_shape=jax.ShapeDtypeStruct((N, Ho, Wo, Cout), jnp.bfloat16),
        grid=(N, n_slab),
        in_specs=[
            in_spec_x,
            # TODO(synk): pipeline_mode=pl.Buffered(1) for these constant blocks.
            pl.BlockSpec((K, Cout), lambda n, i: (0, 0)),
            pl.BlockSpec((1, Cout), lambda n, i: (0, 0)),
        ],
        out_specs=pl.BlockSpec((1, tho, Wo, Cout), lambda n, i: (n, i, 0, 0)),
        compiler_params=pltpu.CompilerParams(
            dimension_semantics=("parallel", "parallel"),
            vmem_limit_bytes=_vmem_limit_bytes()),
        cost_estimate=pl.CostEstimate(flops=flops, transcendentals=0,
                                      bytes_accessed=bytes_accessed),
    )(x_in, w_fused, b2)


# ----------------------------------------------------------------------------
# Standalone MaxPool2d(2,2) (only used when an 'M' does not follow a conv).
# ----------------------------------------------------------------------------
def _maxpool2x2_kernel(x_ref, o_ref):
    # x_ref: (1, H, Wo, 2*C); o_ref: (1, Ho, Wo, C)
    _, Ho, Wo, C = o_ref.shape
    xv = x_ref[0, :2 * Ho]                              # floor mode over rows
    wmax = jnp.maximum(xv[:, :, :C], xv[:, :, C:])      # column pairs
    wmax = wmax.reshape(Ho, 2, Wo, C)
    o_ref[0] = jnp.max(wmax, axis=1).astype(o_ref.dtype)


def maxpool2x2(x_nhwc):
    N, H, W, C = x_nhwc.shape
    Ho, Wo = H // 2, W // 2
    if W % 2:
        x_nhwc = x_nhwc[:, :, :2 * Wo, :]
    xr = x_nhwc.reshape(N, H, Wo, 2 * C)  # free row-major reinterpretation
    return pl.pallas_call(
        _maxpool2x2_kernel,
        out_shape=jax.ShapeDtypeStruct((N, Ho, Wo, C), x_nhwc.dtype),
        grid=(N,),
        in_specs=[pl.BlockSpec((1, H, Wo, 2 * C), lambda n: (n, 0, 0, 0))],
        out_specs=pl.BlockSpec((1, Ho, Wo, C), lambda n: (n, 0, 0, 0)),
        compiler_params=pltpu.CompilerParams(
            dimension_semantics=("parallel",),
            vmem_limit_bytes=_vmem_limit_bytes()),
    )(xr)


# ----------------------------------------------------------------------------
# VGG_features equivalent.
# ----------------------------------------------------------------------------
class VGGFeaturesPallas:
    def __init__(self, cfg, batch_norm=False, init_weights=True, key=None):
        if batch_norm:
            # TODO(synk): BatchNorm2d path not implemented (module default is False).
            raise NotImplementedError("batch_norm=True path not implemented")
        self.batch_norm = batch_norm
        self.kernel_sizes, self.strides, self.paddings = [], [], []
        self.n_layers = 0
        self.layers = []  # ('conv', w_hwio_f32, b_f32) or ('pool', None, None)
        in_c = 3
        k = key if key is not None else jax.random.PRNGKey(0)
        for v in cfg:
            if v == 'M':
                self.layers.append(('pool', None, None))
                self.kernel_sizes.append(2)
                self.strides.append(2)
                self.paddings.append(0)
            else:
                k, kw, kb = jax.random.split(k, 3)
                if init_weights:
                    # kaiming_normal_(mode='fan_out', nonlinearity='relu'); bias=0
                    std = (2.0 / (v * 3 * 3)) ** 0.5
                    w = (std * jax.random.normal(kw, (3, 3, in_c, v))).astype(jnp.float32)
                    bias = jnp.zeros((v,), jnp.float32)
                else:
                    # PyTorch Conv2d default init: kaiming_uniform_(a=sqrt(5)).
                    bound = 1.0 / float(np.sqrt(in_c * 3 * 3))
                    w = jax.random.uniform(kw, (3, 3, in_c, v), jnp.float32,
                                           -bound, bound)
                    bias = jax.random.uniform(kb, (v,), jnp.float32, -bound, bound)
                self.layers.append(('conv', w, bias))
                self.n_layers += 1
                self.kernel_sizes.append(3)
                self.strides.append(1)
                self.paddings.append(1)
                in_c = v

    def __call__(self, x_nchw):
        # NCHW in / NCHW out (PyTorch convention); NHWC + bf16 activations inside.
        x = jnp.transpose(x_nchw, (0, 2, 3, 1)).astype(jnp.bfloat16)
        idx = 0
        while idx < len(self.layers):
            kind, w, bias = self.layers[idx]
            if kind == 'pool':
                x = maxpool2x2(x)
                idx += 1
            else:
                H, W = x.shape[1], x.shape[2]
                fuse = (idx + 1 < len(self.layers)
                        and self.layers[idx + 1][0] == 'pool'
                        and H % 2 == 0 and W % 2 == 0)
                x = conv3x3_relu(x, w, bias, fuse_pool=fuse)
                idx += 2 if fuse else 1
        return jnp.transpose(x, (0, 3, 1, 2)).astype(jnp.float32)

    # Pure-JAX reference (no Pallas) with matching bf16 activation rounding.
    def reference(self, x_nchw):
        x = jnp.transpose(x_nchw, (0, 2, 3, 1)).astype(jnp.bfloat16)
        for kind, w, bias in self.layers:
            if kind == 'pool':
                N, H, W, C = x.shape
                Ho, Wo = H // 2, W // 2
                x = x[:, :2 * Ho, :2 * Wo, :].reshape(N, Ho, 2, Wo, 2, C)
                x = jnp.max(x, axis=(2, 4))
            else:
                y = lax.conv_general_dilated(
                    x, w.astype(jnp.bfloat16), window_strides=(1, 1), padding='SAME',
                    dimension_numbers=('NHWC', 'HWIO', 'NHWC'),
                    preferred_element_type=jnp.float32)
                x = jnp.maximum(y + bias, 0.0).astype(jnp.bfloat16)
        return jnp.transpose(x, (0, 3, 1, 2)).astype(jnp.float32)

    def conv_info(self):
        return (self.kernel_sizes, self.strides, self.paddings)

    def num_layers(self):
        return self.n_layers

    def __repr__(self):
        return 'VGG{}, batch_norm={}'.format(self.num_layers() + 3, self.batch_norm)


if __name__ == "__main__":
    key = jax.random.PRNGKey(0)
    k_param, k_x = jax.random.split(key)
    x = jax.random.normal(k_x, (2, 3, 16, 16), dtype=jnp.float32)  # NCHW

    # Two tiny VGG-grammar configs so every kernel path runs:
    #   pre-im2col'd stem / general conv, each with and without fused 2x2 maxpool.
    for cfg_small in ([8, 8, 'M', 16, 16, 'M'], [8, 'M', 16, 16, 'M']):
        model = VGGFeaturesPallas(cfg_small, batch_norm=False, init_weights=True,
                                  key=k_param)
        y = jax.block_until_ready(model(x))
        out_c = [v for v in cfg_small if v != 'M'][-1]
        out_s = 16 // (2 ** cfg_small.count('M'))
        assert y.shape == (2, out_c, out_s, out_s), (cfg_small, y.shape)

        y_ref = jax.block_until_ready(model.reference(x))
        np.testing.assert_allclose(np.asarray(y, dtype=np.float32),
                                   np.asarray(y_ref, dtype=np.float32),
                                   rtol=3e-2, atol=3e-2)  # bf16 MXU math
    print("KERNEL_OK")
</pallas_src>

<mosaic_0001>
module attributes {stable_mosaic.version = 11 : i64} {
  func.func @_matmul_slab_kernel(%arg0: i32, %arg1: i32, %arg2: memref<1x16x16x27xbf16, #tpu.memory_space<vmem>>, %arg3: memref<27x8xbf16, #tpu.memory_space<vmem>>, %arg4: memref<1x8xf32, #tpu.memory_space<vmem>>, %arg5: memref<1x16x16x8xbf16, #tpu.memory_space<vmem>>) attributes {dimension_semantics = [#tpu.dimension_semantics<parallel>, #tpu.dimension_semantics<parallel>], iteration_bounds = array<i64: 2, 1>, scalar_prefetch = 0 : i64, scratch_operands = 0 : i64, tpu.core_type = #tpu.core_type<tc>, window_params = [{transform_indices = @transform_0, window_bounds = array<i64: 1, 16, 16, 27>}, {pipeline_mode = #tpu.pipeline_mode<synchronous>, transform_indices = @transform_1, window_bounds = array<i64: 27, 8>}, {pipeline_mode = #tpu.pipeline_mode<synchronous>, transform_indices = @transform_2, window_bounds = array<i64: 1, 8>}, {transform_indices = @transform_3, window_bounds = array<i64: 1, 16, 16, 8>}]} {
    %c0 = arith.constant 0 : index
    %c0_0 = arith.constant 0 : index
    %c0_1 = arith.constant 0 : index
    %c0_2 = arith.constant 0 : index
    %0 = vector.load %arg2[%c0, %c0_0, %c0_1, %c0_2] : memref<1x16x16x27xbf16, #tpu.memory_space<vmem>>, vector<1x16x16x27xbf16>
    %1 = vector.shape_cast %0 : vector<1x16x16x27xbf16> to vector<16x16x27xbf16>
    %2 = vector.shape_cast %1 : vector<16x16x27xbf16> to vector<256x27xbf16>
    %c0_3 = arith.constant 0 : index
    %c0_4 = arith.constant 0 : index
    %3 = vector.load %arg3[%c0_3, %c0_4] : memref<27x8xbf16, #tpu.memory_space<vmem>>, vector<27x8xbf16>
    %cst = arith.constant dense<0.000000e+00> : vector<256x8xf32>
    %4 = tpu.matmul %2, %3, %cst {dimension_numbers = #tpu.dot_dimension_numbers<[1], [0], [0], [1], [0, 0, 1, 1], [], []>} : vector<256x27xbf16>, vector<27x8xbf16>, vector<256x8xf32> -> vector<256x8xf32>
    %c0_5 = arith.constant 0 : index
    %c0_6 = arith.constant 0 : index
    %5 = vector.load %arg4[%c0_5, %c0_6] : memref<1x8xf32, #tpu.memory_space<vmem>>, vector<1x8xf32>
    %6 = vector.broadcast %5 : vector<1x8xf32> to vector<256x8xf32>
    %7 = arith.addf %4, %6 : vector<256x8xf32>
    %cst_7 = arith.constant 0.000000e+00 : f32
    %8 = vector.broadcast %cst_7 : f32 to vector<256x8xf32>
    %9 = arith.maximumf %7, %8 : vector<256x8xf32>
    %10 = vector.shape_cast %9 : vector<256x8xf32> to vector<16x16x8xf32>
    %11 = arith.truncf %10 : vector<16x16x8xf32> to vector<16x16x8xbf16>
    %c0_8 = arith.constant 0 : index
    %c0_9 = arith.constant 0 : index
    %c0_10 = arith.constant 0 : index
    %c0_11 = arith.constant 0 : index
    %12 = vector.load %arg5[%c0_8, %c0_9, %c0_10, %c0_11] : memref<1x16x16x8xbf16, #tpu.memory_space<vmem>>, vector<1x16x16x8xbf16>
    %13 = vector.shape_cast %12 : vector<1x16x16x8xbf16> to vector<16x16x8xbf16>
    %14 = vector.shape_cast %11 : vector<16x16x8xbf16> to vector<1x16x16x8xbf16>
    tpu.vector_store %arg5[%c0_8, %c0_9, %c0_10, %c0_11], %14 {strides = array<i32>} : memref<1x16x16x8xbf16, #tpu.memory_space<vmem>>, vector<1x16x16x8xbf16>,
    return
  }
  func.func @transform_0(%arg0: i32, %arg1: i32) -> (i32, i32, i32, i32) {
    %c0_i32 = arith.constant 0 : i32
    %c0_i32_0 = arith.constant 0 : i32
    %c0_i32_1 = arith.constant 0 : i32
    return %arg0, %arg1, %c0_i32, %c0_i32_0 : i32, i32, i32, i32
  }
  func.func @transform_1(%arg0: i32, %arg1: i32) -> (i32, i32) {
    %c0_i32 = arith.constant 0 : i32
    %c0_i32_0 = arith.constant 0 : i32
    %c0_i32_1 = arith.constant 0 : i32
    return %c0_i32, %c0_i32_0 : i32, i32
  }
  func.func @transform_2(%arg0: i32, %arg1: i32) -> (i32, i32) {
    %c0_i32 = arith.constant 0 : i32
    %c0_i32_0 = arith.constant 0 : i32
    %c0_i32_1 = arith.constant 0 : i32
    return %c0_i32, %c0_i32_0 : i32, i32
  }
  func.func @transform_3(%arg0: i32, %arg1: i32) -> (i32, i32, i32, i32) {
    %c0_i32 = arith.constant 0 : i32
    %c0_i32_0 = arith.constant 0 : i32
    %c0_i32_1 = arith.constant 0 : i32
    return %arg0, %arg1, %c0_i32, %c0_i32_0 : i32, i32, i32, i32
  }
}

</mosaic_0001>

<llo_original>
// kernel: tpu_custom_call.1
$region0: #{tpu_custom_call.1}
  #allocation0 [shape = 'u32[]', space=smem, size = 0x4, offset = 0x4, fixed_abs, tag = 'smem constant byte address 0x4 - core index']
  #allocation1 [shape = 'u32[144,128]{1,0:T(1,128)}', space=vmem, size = 0x12000, scoped, tag = 'internal scratch']
  %s0 = inlined_call_operand.hbm [shape: bf16[2,16,16,27], index: 0, kind: input, shape index: {}]
  %s1 = inlined_call_operand.vmem [shape: bf16[27,8], index: 1, kind: input, shape index: {}]
  %s2 = inlined_call_operand.vmem [shape: f32[1,8], index: 2, kind: input, shape index: {}]
  %s3 = inlined_call_operand.vmem [shape: bf16[2,16,16,8], index: 3, kind: output, shape index: {}]
  %s4 = sld [smem:[#allocation0]]
  $region49: #{tpu_custom_call.1} parent=0
    _
  %s6 = ssub.s32 1, %s4
  %s7 = scalar_select 0, %s6, %s4
  $region1: #{tpu_custom_call.1} parent=0
    #allocation2 [shape = 'u8[131072]{0}', space=vmem, size = 0x20000, scoped, tag = 'input window, operand 0']
    #allocation3 [shape = 's32[2]{0}', space=sflag, size = 0x8, scoped, tag = 'scoped memory for tpu_custom_call.1']
    %8 = vsyncpa [#allocation3], 0
    %s9 = scalar_lea.sflag [#allocation3], 1
    %10 = vsyncpa %s9, 0
    loop: start=0, step=1, limit=4
    $region2: #{tpu_custom_call.1} parent=1 // loop_pre_header
      _
    $region3: #{tpu_custom_call.1} parent=1 // loop_header
      %s12 = sphi 0, %s16
      %p13 = scmp.ge.s32.totalorder %s12, 4
      %s19 = sphi 0, %s31
      %s20 = sphi 0, %s27
      %s21 = sphi 0, %s19
      %s22 = sphi 0, %s20
      %s23 = sphi 0, %s21
      %s24 = sphi 0, %s22
      %s36 = sphi 0, %s38
      %s39 = sphi 0, %s36
      %s40 = sphi 0, %s39
      %s56 = sphi 0, %s40
      %s60 = sphi 0, %s60
      %s62 = sphi 0, %s60
      %s63 = sphi 0, %s62
      %s77 = sphi 0, %s63
      %s81 = sphi 0, %s81
      %s83 = sphi 0, %s81
      %s84 = sphi 0, %s83
      %s98 = sphi 0, %s84
      %s106 = sphi 0, %s108
      %s109 = sphi 0, %s106
      %s110 = sphi 0, %s109
      %s126 = sphi 0, %s110
    $region4: #{tpu_custom_call.1} parent=1 // loop_header_branch
      %15 = sbr.rel (%p13) target = $region8
    $region5: #{tpu_custom_call.1} parent=1 // loop_body
      %s17 = ssub.s32 %s12, 1
      %s18 = ssub.s32 %s12, 2
      %s25 = sadd.s32 1, %s20
      %p26 = scmp.ge.s32.totalorder %s25, 1
      %s27 = scalar_select %p26, 0, %s25
      %s28 = sadd.s32 1, %s19
      %s29 = scalar_select %p26, %s28, %s19
      %p30 = scmp.ge.s32.totalorder %s29, 2
      %s31 = scalar_select %p30, 0, %s29
      %s32 = ssub.s32 %s19, %s31
      %s33 = ssub.s32 %s20, %s27
      %s34 = sor.u32 %s32, %s33
      %p35 = scmp.eq.s32.totalorder %s34, 0
      %s37 = sadd.s32 %s36, 1
      %s38 = scalar_select %p35, %s36, %s37
      %p41 = pneg %p35
      %p42 = scmp.eq.s32.totalorder %s12, 1
      %p43 = por %p41, %p42
      %p44 = scmp.ne.s32.totalorder %s36, %s39
      %p45 = scmp.eq.s32.totalorder %s12, 0
      %p46 = por %p44, %p45
      %p47 = scmp.ne.s32.totalorder %s36, %s39
      %p48 = scmp.eq.s32.totalorder %s17, 1
      %p49 = por %p47, %p48
      %p50 = scmp.ne.s32.totalorder %s39, %s40
      %p51 = scmp.eq.s32.totalorder %s17, 0
      %p52 = por %p50, %p51
      %p53 = scmp.ne.s32.totalorder %s39, %s40
      %p54 = scmp.eq.s32.totalorder %s18, 1
      %p55 = por %p53, %p54
      %p57 = scmp.ne.s32.totalorder %s40, %s56
      %p58 = scmp.eq.s32.totalorder %s18, 0
      %p59 = por %p57, %p58
      %s61 = sadd.s32 %s60, 1
      %p64 = scmp.eq.s32.totalorder %s12, 1
      %p65 = scmp.ne.s32.totalorder %s60, %s62
      %p66 = scmp.eq.s32.totalorder %s12, 0
      %p67 = por %p65, %p66
      %p68 = scmp.ne.s32.totalorder %s60, %s62
      %p69 = scmp.eq.s32.totalorder %s17, 1
      %p70 = por %p68, %p69
      %p71 = scmp.ne.s32.totalorder %s62, %s63
      %p72 = scmp.eq.s32.totalorder %s17, 0
      %p73 = por %p71, %p72
      %p74 = scmp.ne.s32.totalorder %s62, %s63
      %p75 = scmp.eq.s32.totalorder %s18, 1
      %p76 = por %p74, %p75
      %p78 = scmp.ne.s32.totalorder %s63, %s77
      %p79 = scmp.eq.s32.totalorder %s18, 0
      %p80 = por %p78, %p79
      %s82 = sadd.s32 %s81, 1
      %p85 = scmp.eq.s32.totalorder %s12, 1
      %p86 = scmp.ne.s32.totalorder %s81, %s83
      %p87 = scmp.eq.s32.totalorder %s12, 0
      %p88 = por %p86, %p87
      %p89 = scmp.ne.s32.totalorder %s81, %s83
      %p90 = scmp.eq.s32.totalorder %s17, 1
      %p91 = por %p89, %p90
      %p92 = scmp.ne.s32.totalorder %s83, %s84
      %p93 = scmp.eq.s32.totalorder %s17, 0
      %p94 = por %p92, %p93
      %p95 = scmp.ne.s32.totalorder %s83, %s84
      %p96 = scmp.eq.s32.totalorder %s18, 1
      %p97 = por %p95, %p96
      %p99 = scmp.ne.s32.totalorder %s84, %s98
      %p100 = scmp.eq.s32.totalorder %s18, 0
      %p101 = por %p99, %p100
      %s102 = ssub.s32 %s19, %s31
      %s103 = ssub.s32 %s20, %s27
      %s104 = sor.u32 %s102, %s103
      %p105 = scmp.eq.s32.totalorder %s104, 0
      %s107 = sadd.s32 %s106, 1
      %s108 = scalar_select %p105, %s106, %s107
      %p111 = pneg %p105
      %p112 = scmp.eq.s32.totalorder %s12, 1
      %p113 = por %p111, %p112
      %p114 = scmp.ne.s32.totalorder %s106, %s109
      %p115 = scmp.eq.s32.totalorder %s12, 0
      %p116 = por %p114, %p115
      %p117 = scmp.ne.s32.totalorder %s106, %s109
      %p118 = scmp.eq.s32.totalorder %s17, 1
      %p119 = por %p117, %p118
      %p120 = scmp.ne.s32.totalorder %s109, %s110
      %p121 = scmp.eq.s32.totalorder %s17, 0
      %p122 = por %p120, %p121
      %p123 = scmp.ne.s32.totalorder %s109, %s110
      %p124 = scmp.eq.s32.totalorder %s18, 1
      %p125 = por %p123, %p124
      %p127 = scmp.ne.s32.totalorder %s110, %s126
      %p128 = scmp.eq.s32.totalorder %s18, 0
      %p129 = por %p127, %p128
      %p130 = scmp.le.s32.totalorder 1, %s12
      %p131 = scmp.lt.s32.totalorder %s12, 3
      %p132 = pnand %p130, %p131
      %p133 = pneg %p132
      // Predicated region
      $region9: #{tpu_custom_call.1} parent=5 // pred_check
        _
      $region10: #{tpu_custom_call.1} parent=5 // pred_check_branch
        %135 = sbr.rel (%p132) target = $region12
      $region11: #{tpu_custom_call.1} parent=5 // pred_region
        %s136 = ssub.s32 %s12, 1
        // Predicated region
        $region13: #{tpu_custom_call.1} parent=11 // pred_check
          %p137 = pneg %p73
        $region14: #{tpu_custom_call.1} parent=11 // pred_check_branch
          %139 = sbr.rel (%p137) target = $region16
        $region15: #{tpu_custom_call.1} parent=11 // pred_region
          _
        $region16: #{tpu_custom_call.1} parent=11 // pred_fallthru
          _
        // Predicated region
        $region17: #{tpu_custom_call.1} parent=11 // pred_check
          %p140 = pneg %p94
        $region18: #{tpu_custom_call.1} parent=11 // pred_check_branch
          %142 = sbr.rel (%p140) target = $region20
        $region19: #{tpu_custom_call.1} parent=11 // pred_region
          _
        $region20: #{tpu_custom_call.1} parent=11 // pred_fallthru
          _
      $region12: #{tpu_custom_call.1} parent=5 // pred_fallthru
        _
      %p143 = scmp.lt.s32.totalorder %s12, 2
      // Predicated region
      $region21: #{tpu_custom_call.1} parent=5 // pred_check
        %p144 = pneg %p143
      $region22: #{tpu_custom_call.1} parent=5 // pred_check_branch
        %146 = sbr.rel (%p144) target = $region24
      $region23: #{tpu_custom_call.1} parent=5 // pred_region
        // Predicated region
        $region25: #{tpu_custom_call.1} parent=23 // pred_check
          %p147 = pneg %p46
        $region26: #{tpu_custom_call.1} parent=23 // pred_check_branch
          %149 = sbr.rel (%p147) target = $region28
        $region27: #{tpu_custom_call.1} parent=23 // pred_region
          %s150 = sand.u32 %s36, 1
          %s151 = scalar_lea.sflag [#allocation3], %s150
          %s152 = sand.u32 %s36, 1
          %s153 = smul.addr %s152, 128
          %s154 = scalar_lea.vmem [#allocation2], %s153
          %s155 = smul.u32 16, %s20
          %s157 = ssub.s32 2048, 2048
          %158 = vsyncadd %s151, %s157
          %s159 = smul.addr %s155, 2
          %s160 = smul.addr %s19, 32
          %s161 = sadd.s32 %s159, %s160
          %s162 = smul.addr %s161, 64
          %s163 = scalar_lea.hbm %s0, %s162
          %s164 = sshll.u32 %s154, 4
          %s165 = int_to_ptr.vmem [resolvable:$true] %s164
          %170 = dma.hbm_to_vmem [thread:$0]  %s163, 2048, %s165, %s151, 64, 64, 4
        $region28: #{tpu_custom_call.1} parent=23 // pred_fallthru
          _
      $region24: #{tpu_custom_call.1} parent=5 // pred_fallthru
        _
      %p171 = scmp.le.s32.totalorder 1, %s12
      %p172 = scmp.lt.s32.totalorder %s12, 3
      %p173 = pnand %p171, %p172
      %p174 = pneg %p173
      // Predicated region
      $region29: #{tpu_custom_call.1} parent=5 // pred_check
        _
      $region30: #{tpu_custom_call.1} parent=5 // pred_check_branch
        %176 = sbr.rel (%p173) target = $region32
      $region31: #{tpu_custom_call.1} parent=5 // pred_region
        %s177 = ssub.s32 %s12, 1
        %s178 = sand.u32 %s39, 1
        %s179 = scalar_lea.sflag [#allocation3], %s178
        %s180 = sand.u32 %s39, 1
        %s181 = smul.addr %s180, 128
        %s182 = scalar_lea.vmem [#allocation2], %s181
        // Predicated region
        $region33: #{tpu_custom_call.1} parent=31 // pred_check
          %p183 = pneg %p52
        $region34: #{tpu_custom_call.1} parent=31 // pred_check_branch
          %185 = sbr.rel (%p183) target = $region36
        $region35: #{tpu_custom_call.1} parent=31 // pred_region
          %186 = dma.done %s179, 2048
        $region36: #{tpu_custom_call.1} parent=31 // pred_fallthru
          _
        %s187 = sand.u32 %s39, 1
        %s188 = scalar_lea.sflag [#allocation3], %s187
        %s189 = sand.u32 %s39, 1
        %s190 = smul.addr %s189, 128
        %s191 = scalar_lea.vmem [#allocation2], %s190
        %p192 = pneg %p52
        %p193 = pneg %p49
        %p194 = pneg %p73
        %p195 = pneg %p70
        %p196 = pneg %p94
        %p197 = pneg %p91
        %p198 = pneg %p122
        %p199 = pneg %p119
        %s200 = smul.u32 16, %s22
        %p201 = scmp.lt.s32.totalorder %s21, 1
        %s202 = scalar_select %p201, %s21, 1
        %p203 = scmp.lt.s32.totalorder %s200, 15
        %s204 = scalar_select %p203, %s200, 15
        %s205 = smul.addr %s204, 2
        %s206 = smul.addr %s202, 32
        %s207 = sadd.s32 %s205, %s206
        %s208 = smul.addr %s207, 4
        %s209 = scalar_lea.vmem %s3, %s208
        %s210 = smul.u32 16, %s22
        %s211 = smul.u32 16, %s22
        %p212 = scmp.lt.s32.totalorder %s21, 1
        %s213 = scalar_select %p212, %s21, 1
        %p214 = scmp.lt.s32.totalorder %s211, 15
        %s215 = scalar_select %p214, %s211, 15
        %s216 = smul.addr %s215, 2
        %s217 = smul.addr %s213, 32
        %s218 = sadd.s32 %s216, %s217
        %s219 = smul.addr %s218, 4
        %s220 = scalar_lea.vmem %s3, %s219
        %s221 = smul.u32 16, %s22
        %v223 = vld [vmem:[%s182] sm:$0xf]
        %v224 = vld [vmem:[%s182 + $0x4] sm:$0xf]
        %v225 = vld [vmem:[%s182 + $0x8] sm:$0xf]
        %v226 = vld [vmem:[%s182 + $0xc] sm:$0xf]
        %v227 = vld [vmem:[%s182 + $0x10] sm:$0xf]
        %v228 = vld [vmem:[%s182 + $0x14] sm:$0xf]
        %v229 = vld [vmem:[%s182 + $0x18] sm:$0xf]
        %v230 = vld [vmem:[%s182 + $0x1c] sm:$0xf]
        %v231 = vld [vmem:[%s182 + $0x20] sm:$0xf]
        %v232 = vld [vmem:[%s182 + $0x24] sm:$0xf]
        %v233 = vld [vmem:[%s182 + $0x28] sm:$0xf]
        %v234 = vld [vmem:[%s182 + $0x2c] sm:$0xf]
        %v235 = vld [vmem:[%s182 + $0x30] sm:$0xf]
        %v236 = vld [vmem:[%s182 + $0x34] sm:$0xf]
        %v237 = vld [vmem:[%s182 + $0x38] sm:$0xf]
        %v238 = vld [vmem:[%s182 + $0x3c] sm:$0xf]
        %v239 = vld [vmem:[%s182 + $0x40] sm:$0xf]
        %v240 = vld [vmem:[%s182 + $0x44] sm:$0xf]
        %v241 = vld [vmem:[%s182 + $0x48] sm:$0xf]
        %v242 = vld [vmem:[%s182 + $0x4c] sm:$0xf]
        %v243 = vld [vmem:[%s182 + $0x50] sm:$0xf]
        %v244 = vld [vmem:[%s182 + $0x54] sm:$0xf]
        %v245 = vld [vmem:[%s182 + $0x58] sm:$0xf]
        %v246 = vld [vmem:[%s182 + $0x5c] sm:$0xf]
        %v247 = vld [vmem:[%s182 + $0x60] sm:$0xf]
        %v248 = vld [vmem:[%s182 + $0x64] sm:$0xf]
        %v249 = vld [vmem:[%s182 + $0x68] sm:$0xf]
        %v250 = vld [vmem:[%s182 + $0x6c] sm:$0xf]
        %v251 = vld [vmem:[%s182 + $0x70] sm:$0xf]
        %v252 = vld [vmem:[%s182 + $0x74] sm:$0xf]
        %v253 = vld [vmem:[%s182 + $0x78] sm:$0xf]
        %v254 = vld [vmem:[%s182 + $0x7c] sm:$0xf]
        %v255 = vld [vmem:[%s1] sm:$0xf]
        %v256 = vld [vmem:[%s1 + $0x4] sm:$0xf]
        %v257 = vld [vmem:[%s1 + $0x8] sm:$0xf]
        %v258 = vld [vmem:[%s1 + $0xc] sm:$0x3]
        %v259 = vld [vmem:[%s2] sm:$0x1]
        %v261 = vlaneseq
        %v262 = vshrl.u32 %v261, 7
        %v263 = vsub.s32 0, %v262
        %v264 = vrot.slane %v259, %v263
        %v298 = vunpack.c.l.b16 %v223
        %v299 = vunpack.c.l.b16 %v224
        %v300 = vunpack.c.l.b16 %v225
        %v301 = vunpack.c.l.b16 %v226
        %v302 = vunpack.c.l.b16 %v227
        %v303 = vunpack.c.l.b16 %v228
        %v304 = vunpack.c.l.b16 %v229
        %v305 = vunpack.c.l.b16 %v230
        %v306 = vunpack.c.l.b16 %v231
        %v307 = vunpack.c.l.b16 %v232
        %v308 = vunpack.c.l.b16 %v233
        %v309 = vunpack.c.l.b16 %v234
        %v310 = vunpack.c.l.b16 %v235
        %v311 = vunpack.c.l.b16 %v236
        %v312 = vunpack.c.l.b16 %v237
        %v313 = vunpack.c.l.b16 %v238
        %v314 = vunpack.c.l.b16 %v239
        %v315 = vunpack.c.l.b16 %v240
        %v316 = vunpack.c.l.b16 %v241
        %v317 = vunpack.c.l.b16 %v242
        %v318 = vunpack.c.l.b16 %v243
        %v319 = vunpack.c.l.b16 %v244
        %v320 = vunpack.c.l.b16 %v245
        %v321 = vunpack.c.l.b16 %v246
        %v322 = vunpack.c.l.b16 %v247
        %v323 = vunpack.c.l.b16 %v248
        %v324 = vunpack.c.l.b16 %v249
        %v325 = vunpack.c.l.b16 %v250
        %v326 = vunpack.c.l.b16 %v251
        %v327 = vunpack.c.l.b16 %v252
        %v328 = vunpack.c.l.b16 %v253
        %v329 = vunpack.c.l.b16 %v254
        %v330 = vpack.c.b16 %v299, %v298
        %v331 = vpack.c.b16 %v301, %v300
        %v332 = vpack.c.b16 %v303, %v302
        %v333 = vpack.c.b16 %v305, %v304
        %v334 = vpack.c.b16 %v307, %v306
        %v335 = vpack.c.b16 %v309, %v308
        %v336 = vpack.c.b16 %v311, %v310
        %v337 = vpack.c.b16 %v313, %v312
        %v338 = vpack.c.b16 %v315, %v314
        %v339 = vpack.c.b16 %v317, %v316
        %v340 = vpack.c.b16 %v319, %v318
        %v341 = vpack.c.b16 %v321, %v320
        %v342 = vpack.c.b16 %v323, %v322
        %v343 = vpack.c.b16 %v325, %v324
        %v344 = vpack.c.b16 %v327, %v326
        %v345 = vpack.c.b16 %v329, %v328
        %v350 = vunpack.c.l.b16 %v255
        %v351 = vunpack.c.l.b16 %v256
        %v352 = vunpack.c.l.b16 %v257
        %v353 = vunpack.c.l.b16 %v258
        %v354 = vpack.c.b16 %v351, %v350
        %v355 = vpack.c.b16 %v353, %v352
        %vm357 = vcmask 220160
        %v359 = vsel %vm357, %v330, 0
        %v362 = vsel %vm357, %v331, 0
        %v365 = vsel %vm357, %v332, 0
        %v368 = vsel %vm357, %v333, 0
        %v371 = vsel %vm357, %v334, 0
        %v374 = vsel %vm357, %v335, 0
        %v377 = vsel %vm357, %v336, 0
        %v380 = vsel %vm357, %v337, 0
        %v383 = vsel %vm357, %v338, 0
        %v386 = vsel %vm357, %v339, 0
        %v389 = vsel %vm357, %v340, 0
        %v392 = vsel %vm357, %v341, 0
        %v395 = vsel %vm357, %v342, 0
        %v398 = vsel %vm357, %v343, 0
        %v401 = vsel %vm357, %v344, 0
        %v404 = vsel %vm357, %v345, 0
        %vm406 = vcmask 1044480
        %vm407 = vcmask 1045504
        %v408 = vsel %vm406, 4294967295, 65535
        %v409 = vsel %vm407, %v408, 0
        %v411 = vand.u32 %v355, %v409
        %413 = vmatprep.subr.bf16.mxu0 0
        %414 = vmatpush1.bf16.msra.mxu0 %v354
        %415 = vmatprep.subr.bf16.mxu0 0
        %416 = vmatpush1.bf16.msra.mxu0 %v411
        %417 = vmatprep.subr.bf16.mxu0 0
        %418 = vmatpush1.bf16.msra.mxu0 0
        %419 = vmatprep.subr.bf16.mxu0 0
        %420 = vmatpush1.bf16.msra.mxu0 0
        %421 = vmatprep.subr.bf16.mxu0 0
        %422 = vmatpush1.bf16.msra.mxu0 0
        %423 = vmatprep.subr.bf16.mxu0 0
        %424 = vmatpush1.bf16.msra.mxu0 0
        %425 = vmatprep.subr.bf16.mxu0 0
        %426 = vmatpush1.bf16.msra.mxu0 0
        %427 = vmatprep.subr.bf16.mxu0 0
        %428 = vmatpush1.bf16.msra.mxu0 0
        %429 = vmatprep.subr.bf16.mxu0 0
        %430 = vmatpush1.bf16.msra.mxu0 0
        %431 = vmatprep.subr.bf16.mxu0 0
        %432 = vmatpush1.bf16.msra.mxu0 0
        %433 = vmatprep.subr.bf16.mxu0 0
        %434 = vmatpush1.bf16.msra.mxu0 0
        %435 = vmatprep.subr.bf16.mxu0 0
        %436 = vmatpush1.bf16.msra.mxu0 0
        %437 = vmatprep.subr.bf16.mxu0 0
        %438 = vmatpush1.bf16.msra.mxu0 0
        %439 = vmatprep.subr.bf16.mxu0 0
        %440 = vmatpush1.bf16.msra.mxu0 0
        %441 = vmatprep.subr.bf16.mxu0 0
        %442 = vmatpush1.bf16.msra.mxu0 0
        %443 = vmatprep.subr.bf16.mxu0 0
        %444 = vmatpush1.bf16.msra.mxu0 0
        %445 = vmatprep.mubr.bf16.mxu0 0
        %446 = vmatmul.mubr.bf16.gmra.mrb[0].mxu0 %v359
        %v447 = vpop.f32.mrb[0].mxu0
        %v448 = vadd.f32 %v264, %v447
        %v449 = vpop.f32.mrb[0].mxu0
        %v450 = vpop.f32.mrb[0].mxu0
        %v451 = vadd.f32 %v264, %v450
        %v452 = vpop.f32.mrb[0].mxu0
        %453 = vmatprep.mubr.bf16.mxu0 0
        %454 = vmatmul.mubr.bf16.gmra.mrb[0].mxu0 %v362
        %v455 = vpop.f32.mrb[0].mxu0
        %v456 = vadd.f32 %v264, %v455
        %v457 = vpop.f32.mrb[0].mxu0
        %v458 = vpop.f32.mrb[0].mxu0
        %v459 = vadd.f32 %v264, %v458
        %v460 = vpop.f32.mrb[0].mxu0
        %461 = vmatprep.mubr.bf16.mxu0 0
        %462 = vmatmul.mubr.bf16.gmra.mrb[0].mxu0 %v365
        %v463 = vpop.f32.mrb[0].mxu0
        %v464 = vadd.f32 %v264, %v463
        %v465 = vpop.f32.mrb[0].mxu0
        %v466 = vpop.f32.mrb[0].mxu0
        %v467 = vadd.f32 %v264, %v466
        %v468 = vpop.f32.mrb[0].mxu0
        %469 = vmatprep.mubr.bf16.mxu0 0
        %470 = vmatmul.mubr.bf16.gmra.mrb[0].mxu0 %v368
        %v471 = vpop.f32.mrb[0].mxu0
        %v472 = vadd.f32 %v264, %v471
        %v473 = vpop.f32.mrb[0].mxu0
        %v474 = vpop.f32.mrb[0].mxu0
        %v475 = vadd.f32 %v264, %v474
        %v476 = vpop.f32.mrb[0].mxu0
        %477 = vmatprep.mubr.bf16.mxu0 0
        %478 = vmatmul.mubr.bf16.gmra.mrb[0].mxu0 %v371
        %v479 = vpop.f32.mrb[0].mxu0
        %v480 = vadd.f32 %v264, %v479
        %v481 = vpop.f32.mrb[0].mxu0
        %v482 = vpop.f32.mrb[0].mxu0
        %v483 = vadd.f32 %v264, %v482
        %v484 = vpop.f32.mrb[0].mxu0
        %485 = vmatprep.mubr.bf16.mxu0 0
        %486 = vmatmul.mubr.bf16.gmra.mrb[0].mxu0 %v374
        %v487 = vpop.f32.mrb[0].mxu0
        %v488 = vadd.f32 %v264, %v487
        %v489 = vpop.f32.mrb[0].mxu0
        %v490 = vpop.f32.mrb[0].mxu0
        %v491 = vadd.f32 %v264, %v490
        %v492 = vpop.f32.mrb[0].mxu0
        %493 = vmatprep.mubr.bf16.mxu0 0
        %494 = vmatmul.mubr.bf16.gmra.mrb[0].mxu0 %v377
        %v495 = vpop.f32.mrb[0].mxu0
        %v496 = vadd.f32 %v264, %v495
        %v497 = vpop.f32.mrb[0].mxu0
        %v498 = vpop.f32.mrb[0].mxu0
        %v499 = vadd.f32 %v264, %v498
        %v500 = vpop.f32.mrb[0].mxu0
        %501 = vmatprep.mubr.bf16.mxu0 0
        %502 = vmatmul.mubr.bf16.gmra.mrb[0].mxu0 %v380
        %v503 = vpop.f32.mrb[0].mxu0
        %v504 = vadd.f32 %v264, %v503
        %v505 = vpop.f32.mrb[0].mxu0
        %v506 = vpop.f32.mrb[0].mxu0
        %v507 = vadd.f32 %v264, %v506
        %v508 = vpop.f32.mrb[0].mxu0
        %509 = vmatprep.mubr.bf16.mxu0 0
        %510 = vmatmul.mubr.bf16.gmra.mrb[0].mxu0 %v383
        %v511 = vpop.f32.mrb[0].mxu0
        %v512 = vadd.f32 %v264, %v511
        %v513 = vpop.f32.mrb[0].mxu0
        %v514 = vpop.f32.mrb[0].mxu0
        %v515 = vadd.f32 %v264, %v514
        %v516 = vpop.f32.mrb[0].mxu0
        %517 = vmatprep.mubr.bf16.mxu0 0
        %518 = vmatmul.mubr.bf16.gmra.mrb[0].mxu0 %v386
        %v519 = vpop.f32.mrb[0].mxu0
        %v520 = vadd.f32 %v264, %v519
        %v521 = vpop.f32.mrb[0].mxu0
        %v522 = vpop.f32.mrb[0].mxu0
        %v523 = vadd.f32 %v264, %v522
        %v524 = vpop.f32.mrb[0].mxu0
        %525 = vmatprep.mubr.bf16.mxu0 0
        %526 = vmatmul.mubr.bf16.gmra.mrb[0].mxu0 %v389
        %v527 = vpop.f32.mrb[0].mxu0
        %v528 = vadd.f32 %v264, %v527
        %v529 = vpop.f32.mrb[0].mxu0
        %v530 = vpop.f32.mrb[0].mxu0
        %v531 = vadd.f32 %v264, %v530
        %v532 = vpop.f32.mrb[0].mxu0
        %533 = vmatprep.mubr.bf16.mxu0 0
        %534 = vmatmul.mubr.bf16.gmra.mrb[0].mxu0 %v392
        %v535 = vpop.f32.mrb[0].mxu0
        %v536 = vadd.f32 %v264, %v535
        %v537 = vpop.f32.mrb[0].mxu0
        %v538 = vpop.f32.mrb[0].mxu0
        %v539 = vadd.f32 %v264, %v538
        %v540 = vpop.f32.mrb[0].mxu0
        %541 = vmatprep.mubr.bf16.mxu0 0
        %542 = vmatmul.mubr.bf16.gmra.mrb[0].mxu0 %v395
        %v543 = vpop.f32.mrb[0].mxu0
        %v544 = vadd.f32 %v264, %v543
        %v545 = vpop.f32.mrb[0].mxu0
        %v546 = vpop.f32.mrb[0].mxu0
        %v547 = vadd.f32 %v264, %v546
        %v548 = vpop.f32.mrb[0].mxu0
        %549 = vmatprep.mubr.bf16.mxu0 0
        %550 = vmatmul.mubr.bf16.gmra.mrb[0].mxu0 %v398
        %v551 = vpop.f32.mrb[0].mxu0
        %v552 = vadd.f32 %v264, %v551
        %v553 = vpop.f32.mrb[0].mxu0
        %v554 = vpop.f32.mrb[0].mxu0
        %v555 = vadd.f32 %v264, %v554
        %v556 = vpop.f32.mrb[0].mxu0
        %557 = vmatprep.mubr.bf16.mxu0 0
        %558 = vmatmul.mubr.bf16.gmra.mrb[0].mxu0 %v401
        %v559 = vpop.f32.mrb[0].mxu0
        %v560 = vadd.f32 %v264, %v559
        %v561 = vpop.f32.mrb[0].mxu0
        %v562 = vpop.f32.mrb[0].mxu0
        %v563 = vadd.f32 %v264, %v562
        %v564 = vpop.f32.mrb[0].mxu0
        %565 = vmatprep.mubr.bf16.mxu0 0
        %566 = vmatmul.mubr.bf16.gmra.mrb[0].mxu0 %v404
        %v567 = vpop.f32.mrb[0].mxu0
        %v568 = vadd.f32 %v264, %v567
        %v569 = vpop.f32.mrb[0].mxu0
        %v570 = vpop.f32.mrb[0].mxu0
        %v571 = vadd.f32 %v264, %v570
        %v572 = vpop.f32.mrb[0].mxu0
        %573 = vdwg.mxu0
        %v574 = vmax.f32 %v448, 0.0
        %v575 = vmax.f32 %v451, 0.0
        %v576 = vmax.f32 %v456, 0.0
        %v577 = vmax.f32 %v459, 0.0
        %v578 = vmax.f32 %v464, 0.0
        %v579 = vmax.f32 %v467, 0.0
        %v580 = vmax.f32 %v472, 0.0
        %v581 = vmax.f32 %v475, 0.0
        %v582 = vmax.f32 %v480, 0.0
        %v583 = vmax.f32 %v483, 0.0
        %v584 = vmax.f32 %v488, 0.0
        %v585 = vmax.f32 %v491, 0.0
        %v586 = vmax.f32 %v496, 0.0
        %v587 = vmax.f32 %v499, 0.0
        %v588 = vmax.f32 %v504, 0.0
        %v589 = vmax.f32 %v507, 0.0
        %v590 = vmax.f32 %v512, 0.0
        %v591 = vmax.f32 %v515, 0.0
        %v592 = vmax.f32 %v520, 0.0
        %v593 = vmax.f32 %v523, 0.0
        %v594 = vmax.f32 %v528, 0.0
        %v595 = vmax.f32 %v531, 0.0
        %v596 = vmax.f32 %v536, 0.0
        %v597 = vmax.f32 %v539, 0.0
        %v598 = vmax.f32 %v544, 0.0
        %v599 = vmax.f32 %v547, 0.0
        %v600 = vmax.f32 %v552, 0.0
        %v601 = vmax.f32 %v555, 0.0
        %v602 = vmax.f32 %v560, 0.0
        %v603 = vmax.f32 %v563, 0.0
        %v604 = vmax.f32 %v568, 0.0
        %v605 = vmax.f32 %v571, 0.0
        %v606 = vpack.c.bf16 %v575, %v574
        %v607 = vpack.c.bf16 %v577, %v576
        %v608 = vpack.c.bf16 %v579, %v578
        %v609 = vpack.c.bf16 %v581, %v580
        %v610 = vpack.c.bf16 %v583, %v582
        %v611 = vpack.c.bf16 %v585, %v584
        %v612 = vpack.c.bf16 %v587, %v586
        %v613 = vpack.c.bf16 %v589, %v588
        %v614 = vpack.c.bf16 %v591, %v590
        %v615 = vpack.c.bf16 %v593, %v592
        %v616 = vpack.c.bf16 %v595, %v594
        %v617 = vpack.c.bf16 %v597, %v596
        %v618 = vpack.c.bf16 %v599, %v598
        %v619 = vpack.c.bf16 %v601, %v600
        %v620 = vpack.c.bf16 %v603, %v602
        %v621 = vpack.c.bf16 %v605, %v604
        %v638 = vunpack.c.l.b16 %v606
        %v639 = vunpack.c.h.b16 %v606
        %v640 = vunpack.c.l.b16 %v607
        %v641 = vunpack.c.h.b16 %v607
        %v642 = vunpack.c.l.b16 %v608
        %v643 = vunpack.c.h.b16 %v608
        %v644 = vunpack.c.l.b16 %v609
        %v645 = vunpack.c.h.b16 %v609
        %v646 = vunpack.c.l.b16 %v610
        %v647 = vunpack.c.h.b16 %v610
        %v648 = vunpack.c.l.b16 %v611
        %v649 = vunpack.c.h.b16 %v611
        %v650 = vunpack.c.l.b16 %v612
        %v651 = vunpack.c.h.b16 %v612
        %v652 = vunpack.c.l.b16 %v613
        %v653 = vunpack.c.h.b16 %v613
        %v654 = vunpack.c.l.b16 %v614
        %v655 = vunpack.c.h.b16 %v614
        %v656 = vunpack.c.l.b16 %v615
        %v657 = vunpack.c.h.b16 %v615
        %v658 = vunpack.c.l.b16 %v616
        %v659 = vunpack.c.h.b16 %v616
        %v660 = vunpack.c.l.b16 %v617
        %v661 = vunpack.c.h.b16 %v617
        %v662 = vunpack.c.l.b16 %v618
        %v663 = vunpack.c.h.b16 %v618
        %v664 = vunpack.c.l.b16 %v619
        %v665 = vunpack.c.h.b16 %v619
        %v666 = vunpack.c.l.b16 %v620
        %v667 = vunpack.c.h.b16 %v620
        %v668 = vunpack.c.l.b16 %v621
        %v669 = vunpack.c.h.b16 %v621
        %v670 = vpack.c.b16 %v638, %v638
        %v671 = vpack.c.b16 %v639, %v639
        %v672 = vpack.c.b16 %v640, %v640
        %v673 = vpack.c.b16 %v641, %v641
        %v674 = vpack.c.b16 %v642, %v642
        %v675 = vpack.c.b16 %v643, %v643
        %v676 = vpack.c.b16 %v644, %v644
        %v677 = vpack.c.b16 %v645, %v645
        %v678 = vpack.c.b16 %v646, %v646
        %v679 = vpack.c.b16 %v647, %v647
        %v680 = vpack.c.b16 %v648, %v648
        %v681 = vpack.c.b16 %v649, %v649
        %v682 = vpack.c.b16 %v650, %v650
        %v683 = vpack.c.b16 %v651, %v651
        %v684 = vpack.c.b16 %v652, %v652
        %v685 = vpack.c.b16 %v653, %v653
        %v686 = vpack.c.b16 %v654, %v654
        %v687 = vpack.c.b16 %v655, %v655
        %v688 = vpack.c.b16 %v656, %v656
        %v689 = vpack.c.b16 %v657, %v657
        %v690 = vpack.c.b16 %v658, %v658
        %v691 = vpack.c.b16 %v659, %v659
        %v692 = vpack.c.b16 %v660, %v660
        %v693 = vpack.c.b16 %v661, %v661
        %v694 = vpack.c.b16 %v662, %v662
        %v695 = vpack.c.b16 %v663, %v663
        %v696 = vpack.c.b16 %v664, %v664
        %v697 = vpack.c.b16 %v665, %v665
        %v698 = vpack.c.b16 %v666, %v666
        %v699 = vpack.c.b16 %v667, %v667
        %v700 = vpack.c.b16 %v668, %v668
        %v701 = vpack.c.b16 %v669, %v669
        %vm734 = vcmask 60416
        %735 = vst.msk [vmem:[%s220] sm:$0xf] %vm734, %v670
        %736 = vst.msk [vmem:[%s220 + $0x4] sm:$0xf] %vm734, %v671
        %737 = vst.msk [vmem:[%s220 + $0x8] sm:$0xf] %vm734, %v672
        %738 = vst.msk [vmem:[%s220 + $0xc] sm:$0xf] %vm734, %v673
        %739 = vst.msk [vmem:[%s220 + $0x10] sm:$0xf] %vm734, %v674
        %740 = vst.msk [vmem:[%s220 + $0x14] sm:$0xf] %vm734, %v675
        %741 = vst.msk [vmem:[%s220 + $0x18] sm:$0xf] %vm734, %v676
        %742 = vst.msk [vmem:[%s220 + $0x1c] sm:$0xf] %vm734, %v677
        %743 = vst.msk [vmem:[%s220 + $0x20] sm:$0xf] %vm734, %v678
        %744 = vst.msk [vmem:[%s220 + $0x24] sm:$0xf] %vm734, %v679
        %745 = vst.msk [vmem:[%s220 + $0x28] sm:$0xf] %vm734, %v680
        %746 = vst.msk [vmem:[%s220 + $0x2c] sm:$0xf] %vm734, %v681
        %747 = vst.msk [vmem:[%s220 + $0x30] sm:$0xf] %vm734, %v682
        %748 = vst.msk [vmem:[%s220 + $0x34] sm:$0xf] %vm734, %v683
        %749 = vst.msk [vmem:[%s220 + $0x38] sm:$0xf] %vm734, %v684
        %750 = vst.msk [vmem:[%s220 + $0x3c] sm:$0xf] %vm734, %v685
        %751 = vst.msk [vmem:[%s220 + $0x40] sm:$0xf] %vm734, %v686
        %752 = vst.msk [vmem:[%s220 + $0x44] sm:$0xf] %vm734, %v687
        %753 = vst.msk [vmem:[%s220 + $0x48] sm:$0xf] %vm734, %v688
        %754 = vst.msk [vmem:[%s220 + $0x4c] sm:$0xf] %vm734, %v689
        %755 = vst.msk [vmem:[%s220 + $0x50] sm:$0xf] %vm734, %v690
        %756 = vst.msk [vmem:[%s220 + $0x54] sm:$0xf] %vm734, %v691
        %757 = vst.msk [vmem:[%s220 + $0x58] sm:$0xf] %vm734, %v692
        %758 = vst.msk [vmem:[%s220 + $0x5c] sm:$0xf] %vm734, %v693
        %759 = vst.msk [vmem:[%s220 + $0x60] sm:$0xf] %vm734, %v694
        %760 = vst.msk [vmem:[%s220 + $0x64] sm:$0xf] %vm734, %v695
        %761 = vst.msk [vmem:[%s220 + $0x68] sm:$0xf] %vm734, %v696
        %762 = vst.msk [vmem:[%s220 + $0x6c] sm:$0xf] %vm734, %v697
        %763 = vst.msk [vmem:[%s220 + $0x70] sm:$0xf] %vm734, %v698
        %764 = vst.msk [vmem:[%s220 + $0x74] sm:$0xf] %vm734, %v699
        %765 = vst.msk [vmem:[%s220 + $0x78] sm:$0xf] %vm734, %v700
        %766 = vst.msk [vmem:[%s220 + $0x7c] sm:$0xf] %vm734, %v701
        %s767 = smul.u32 16, %s22
        %p768 = scmp.lt.s32.totalorder %s21, 1
        %s769 = scalar_select %p768, %s21, 1
        %p770 = scmp.lt.s32.totalorder %s767, 15
        %s771 = scalar_select %p770, %s767, 15
        %s772 = smul.addr %s771, 2
        %s773 = smul.addr %s769, 32
        %s774 = sadd.s32 %s772, %s773
        %s775 = smul.addr %s774, 4
        %s776 = scalar_lea.vmem %s3, %s775
        // Predicated region
        $region37: #{tpu_custom_call.1} parent=31 // pred_check
          %p777 = pneg %p119
        $region38: #{tpu_custom_call.1} parent=31 // pred_check_branch
          %779 = sbr.rel (%p777) target = $region40
        $region39: #{tpu_custom_call.1} parent=31 // pred_region
          %s780 = smul.u32 16, %s22
        $region40: #{tpu_custom_call.1} parent=31 // pred_fallthru
          _
      $region32: #{tpu_custom_call.1} parent=5 // pred_fallthru
        _
      %p781 = scmp.le.s32.totalorder 2, %s12
      // Predicated region
      $region41: #{tpu_custom_call.1} parent=5 // pred_check
        %p782 = pneg %p781
      $region42: #{tpu_custom_call.1} parent=5 // pred_check_branch
        %784 = sbr.rel (%p782) target = $region44
      $region43: #{tpu_custom_call.1} parent=5 // pred_region
        %s785 = ssub.s32 %s12, 2
        // Predicated region
        $region45: #{tpu_custom_call.1} parent=43 // pred_check
          %p786 = pneg %p125
        $region46: #{tpu_custom_call.1} parent=43 // pred_check_branch
          %788 = sbr.rel (%p786) target = $region48
        $region47: #{tpu_custom_call.1} parent=43 // pred_region
          %s789 = smul.u32 16, %s24
          %p790 = scmp.lt.s32.totalorder %s23, 1
          %s791 = scalar_select %p790, %s23, 1
          %p792 = scmp.lt.s32.totalorder %s789, 15
          %s793 = scalar_select %p792, %s789, 15
          %s794 = smul.addr %s793, 2
          %s795 = smul.addr %s791, 32
          %s796 = sadd.s32 %s794, %s795
          %s797 = smul.addr %s796, 4
          %s798 = scalar_lea.vmem %s3, %s797
        $region48: #{tpu_custom_call.1} parent=43 // pred_fallthru
          _
      $region44: #{tpu_custom_call.1} parent=5 // pred_fallthru
        _
    $region6: #{tpu_custom_call.1} parent=1 // loop_footer
      %s16 = sadd.s32 1, %s12
    $region7: #{tpu_custom_call.1} parent=1 // loop_footer_branch
      %11 = sbr.rel target = $region3
    $region8: #{tpu_custom_call.1} parent=1 // loop_exit
      _
    %799 = vsyncpa [#allocation3], 1
    %s800 = scalar_lea.sflag [#allocation3], 1
    %801 = vsyncpa %s800, 1

</llo_original>
